<compile_context>
chip_gen: v6e
topology: v6e:2x2x1
jax: 0.10.0
libtpu: 0.0.40
codegen_flags: <defaults>
</compile_context>

<pallas_src>
import functools

import jax
import jax.numpy as jnp
from jax import lax
from jax.experimental import pallas as pl
from jax.experimental.pallas import tpu as pltpu

LANE = 128            # lane width
SUB = 8               # f32 sublane tile
MAX_BLOCK_ROWS = 4096 # 4096*128*4B = 2 MiB per operand per block (mult of 8 and 16)


def _mse_partial_kernel(a_ref, b_ref, o_ref, *, total_rows, block_rows):
    """Write the (8, 128) partial sum of (a-b)^2 for this grid step's row block."""
    a = a_ref[...].astype(jnp.float32)
    b = b_ref[...].astype(jnp.float32)
    d = a - b
    d2 = d * d

    # Mask garbage rows of the ragged last block (static check: only emitted if ragged).
    if total_rows % block_rows != 0:
        row = pl.program_id(0) * block_rows + lax.broadcasted_iota(
            jnp.int32, (block_rows, 1), 0)
        d2 = jnp.where(row < total_rows, d2, 0.0)

    # (BLOCK_R, 128) -> (BLOCK_R//8, 8, 128): tile-aligned reshape, reduced on the VPU.
    d2 = d2.reshape(block_rows // SUB, SUB, LANE)
    o_ref[...] = jnp.sum(d2, axis=0)


def _mse_pallas(a, b):
    """MSE(a, b) = mean((a - b)^2); the heavy reduction runs in a Pallas kernel."""
    assert a.shape == b.shape, (a.shape, b.shape)
    n = a.size

    a_flat = jnp.ravel(a)          # free reshape (contiguous), original dtype kept
    b_flat = jnp.ravel(b)

    pad_unit = SUB * LANE          # 1024 elements
    n_pad = ((n + pad_unit - 1) // pad_unit) * pad_unit
    if n_pad != n:
        # Only misaligned sizes pay this one extra copy; zero-padding both operands
        # identically contributes 0 to the sum of squared differences.
        a_flat = jnp.pad(a_flat, (0, n_pad - n))
        b_flat = jnp.pad(b_flat, (0, n_pad - n))

    rows = n_pad // LANE           # always a multiple of 8
    a2 = a_flat.reshape(rows, LANE)
    b2 = b_flat.reshape(rows, LANE)

    block_rows = min(MAX_BLOCK_ROWS, rows)   # either full dim or a multiple of 8/16
    num_blocks = pl.cdiv(rows, block_rows)

    kernel = functools.partial(
        _mse_partial_kernel, total_rows=rows, block_rows=block_rows)

    partials = pl.pallas_call(
        kernel,
        out_shape=jax.ShapeDtypeStruct((num_blocks * SUB, LANE), jnp.float32),
        grid_spec=pltpu.PrefetchScalarGridSpec(
            num_scalar_prefetch=0,
            grid=(num_blocks,),
            in_specs=[
                pl.BlockSpec((block_rows, LANE), lambda i: (i, 0)),
                pl.BlockSpec((block_rows, LANE), lambda i: (i, 0)),
            ],
            out_specs=pl.BlockSpec((SUB, LANE), lambda i: (i, 0)),
        ),
        compiler_params=pltpu.CompilerParams(
            dimension_semantics=("parallel",)),  # no carried state -> v7x can use both TCs
    )(a2, b2)

    # Tiny finalize (fused under jit): sum the lane-dense partial slab, divide by count.
    return jnp.sum(partials) / n


_mse_pallas_jit = jax.jit(_mse_pallas)


def mel_spectrogram_loss(output, target):
    """Faithful forward pass of MelSpectrogramLoss.

    Returns (loss, per_pair_mses).  `loss` is always 0.0 -- the PyTorch module computes
    each pair's MSE but never accumulates it, and `target` is unused.
    """
    del target  # unused, as in the reference module
    loss = 0.0
    per_pair_mses = []
    for item in output:
        if len(item) == 2:
            # Computed (hot path through the Pallas kernel), then discarded by the loss,
            # exactly like the reference.  Same-shape pairs share one compiled kernel.
            per_pair_mses.append(_mse_pallas_jit(item[0], item[1]))
    return loss, per_pair_mses


if __name__ == "__main__":
    key = jax.random.PRNGKey(0)
    k0, k1, k2, k3, k4, k5, k6 = jax.random.split(key, 7)

    # Small mel-spectrogram-like tensors: (batch, n_mels, frames).
    shape_a = (2, 128, 16)   # numel 4096  -> aligned path (no pad, no extra copy)
    shape_b = (2, 80, 16)    # numel 2560  -> exercises the pad/misaligned path
    pair0 = (jax.random.normal(k0, shape_a, jnp.float32),
             jax.random.normal(k1, shape_a, jnp.float32))
    pair1 = (jax.random.normal(k2, shape_a, jnp.float32),
             jax.random.normal(k3, shape_a, jnp.float32))
    pair2 = (jax.random.normal(k4, shape_b, jnp.float32),
             jax.random.normal(k5, shape_b, jnp.float32))
    output = [pair0, pair1, pair2]
    target = jax.random.normal(k6, shape_a, jnp.float32)  # unused by the module

    loss, mses = mel_spectrogram_loss(output, target)
    mses = [jax.block_until_ready(m) for m in mses]

    # Sanity-check the kernel's MSE against a pure-JAX reference.
    for (a, b), m in zip(output, mses):
        ref = jnp.mean((a - b) ** 2)
        assert jnp.allclose(m, ref, rtol=1e-5, atol=1e-5), (float(m), float(ref))

    # Module semantics: returned loss is exactly 0.0.
    assert loss == 0.0

    print("KERNEL_OK")
</pallas_src>

<mosaic_0001>
module attributes {stable_mosaic.version = 11 : i64} {
  func.func @_mse_partial_kernel(%arg0: i32, %arg1: memref<32x128xf32, #tpu.memory_space<vmem>>, %arg2: memref<32x128xf32, #tpu.memory_space<vmem>>, %arg3: memref<8x128xf32, #tpu.memory_space<vmem>>) attributes {dimension_semantics = [#tpu.dimension_semantics<parallel>], iteration_bounds = array<i64: 1>, scalar_prefetch = 0 : i64, scratch_operands = 0 : i64, tpu.core_type = #tpu.core_type<tc>, window_params = [{transform_indices = @transform_0, window_bounds = array<i64: 32, 128>}, {transform_indices = @transform_1, window_bounds = array<i64: 32, 128>}, {transform_indices = @transform_2, window_bounds = array<i64: 8, 128>}]} {
    %c0 = arith.constant 0 : index
    %c0_0 = arith.constant 0 : index
    %0 = vector.load %arg1[%c0, %c0_0] : memref<32x128xf32, #tpu.memory_space<vmem>>, vector<32x128xf32>
    %c0_1 = arith.constant 0 : index
    %c0_2 = arith.constant 0 : index
    %1 = vector.load %arg2[%c0_1, %c0_2] : memref<32x128xf32, #tpu.memory_space<vmem>>, vector<32x128xf32>
    %2 = arith.subf %0, %1 : vector<32x128xf32>
    %3 = arith.mulf %2, %2 : vector<32x128xf32>
    %4 = vector.shape_cast %3 : vector<32x128xf32> to vector<4x8x128xf32>
    %cst = arith.constant dense<0.000000e+00> : vector<8x128xf32>
    %5 = vector.multi_reduction <add>, %4, %cst [0] : vector<4x8x128xf32> to vector<8x128xf32>
    %c0_3 = arith.constant 0 : index
    %c0_4 = arith.constant 0 : index
    %6 = vector.load %arg3[%c0_3, %c0_4] : memref<8x128xf32, #tpu.memory_space<vmem>>, vector<8x128xf32>
    tpu.vector_store %arg3[%c0_3, %c0_4], %5 {strides = array<i32>} : memref<8x128xf32, #tpu.memory_space<vmem>>, vector<8x128xf32>,
    return
  }
  func.func @transform_0(%arg0: i32) -> (i32, i32) {
    %c0_i32 = arith.constant 0 : i32
    %c0_i32_0 = arith.constant 0 : i32
    return %arg0, %c0_i32 : i32, i32
  }
  func.func @transform_1(%arg0: i32) -> (i32, i32) {
    %c0_i32 = arith.constant 0 : i32
    %c0_i32_0 = arith.constant 0 : i32
    return %arg0, %c0_i32 : i32, i32
  }
  func.func @transform_2(%arg0: i32) -> (i32, i32) {
    %c0_i32 = arith.constant 0 : i32
    %c0_i32_0 = arith.constant 0 : i32
    return %arg0, %c0_i32 : i32, i32
  }
}

</mosaic_0001>

<llo_original>
// kernel: _mse_pallas.1
$region0: #{_mse_pallas.1}
  #allocation0 [shape = 'u32[]', space=smem, size = 0x4, offset = 0x4, fixed_abs, tag = 'smem constant byte address 0x4 - core index']
  #allocation1 [shape = 'u32[144,128]{1,0:T(1,128)}', space=vmem, size = 0x12000, scoped, tag = 'internal scratch']
  %s0 = inlined_call_operand.vmem [shape: f32[32,128], index: 0, kind: input, shape index: {}]
  %s1 = inlined_call_operand.vmem [shape: f32[32,128], index: 1, kind: input, shape index: {}]
  %s2 = inlined_call_operand.vmem [shape: f32[8,128], index: 2, kind: output, shape index: {}]
  %s3 = sld [smem:[#allocation0]]
  $region18: #{_mse_pallas.1} parent=0
    _
  %s5 = ssub.s32 1, %s3
  %s6 = scalar_select 0, %s5, %s3
  // Predicated region
  $region2: #{_mse_pallas.1} parent=0 // pred_check
    _
  $region3: #{_mse_pallas.1} parent=0 // pred_check_branch
    %8 = sbr.rel (0) target = $region5
  $region4: #{_mse_pallas.1} parent=0 // pred_region
    _
  $region5: #{_mse_pallas.1} parent=0 // pred_fallthru
    _
  // Predicated region
  $region6: #{_mse_pallas.1} parent=0 // pred_check
    _
  $region7: #{_mse_pallas.1} parent=0 // pred_check_branch
    %10 = sbr.rel (0) target = $region9
  $region8: #{_mse_pallas.1} parent=0 // pred_region
    _
  $region9: #{_mse_pallas.1} parent=0 // pred_fallthru
    _
  %v11 = vld [vmem:[%s0] sm:$0xff]
  %v12 = vld [vmem:[%s0 + $0x8] sm:$0xff]
  %v13 = vld [vmem:[%s0 + $0x10] sm:$0xff]
  %v14 = vld [vmem:[%s0 + $0x18] sm:$0xff]
  %v15 = vld [vmem:[%s1] sm:$0xff]
  %v16 = vld [vmem:[%s1 + $0x8] sm:$0xff]
  %v17 = vld [vmem:[%s1 + $0x10] sm:$0xff]
  %v18 = vld [vmem:[%s1 + $0x18] sm:$0xff]
  %v19 = vsub.f32 %v11, %v15
  %v20 = vsub.f32 %v12, %v16
  %v21 = vsub.f32 %v13, %v17
  %v22 = vsub.f32 %v14, %v18
  %v23 = vmul.f32 %v19, %v19
  %v24 = vmul.f32 %v20, %v20
  %v25 = vmul.f32 %v21, %v21
  %v26 = vmul.f32 %v22, %v22
  %v27 = vadd.f32 %v23, %v24
  %v28 = vadd.f32 %v27, %v25
  %v29 = vadd.f32 %v28, %v26
  %30 = vst [vmem:[%s2] sm:$0xff] %v29
  // Predicated region
  $region10: #{_mse_pallas.1} parent=0 // pred_check
    _
  $region11: #{_mse_pallas.1} parent=0 // pred_check_branch
    %32 = sbr.rel (0) target = $region13
  $region12: #{_mse_pallas.1} parent=0 // pred_region
    _
  $region13: #{_mse_pallas.1} parent=0 // pred_fallthru
    _
  // Predicated region
  $region14: #{_mse_pallas.1} parent=0 // pred_check
    _
  $region15: #{_mse_pallas.1} parent=0 // pred_check_branch
    %34 = sbr.rel (0) target = $region17
  $region16: #{_mse_pallas.1} parent=0 // pred_region
    _
  $region17: #{_mse_pallas.1} parent=0 // pred_fallthru
    _

</llo_original>
